<compile_context>
chip_gen: v7x
topology: tpu7x:2x2x1
jax: 0.10.0
libtpu: 0.0.40
codegen_flags: <defaults>
</compile_context>

<pallas_src>
import jax
import jax.numpy as jnp
from jax.experimental import pallas as pl
from jax.experimental.pallas import tpu as pltpu

D_IN = 10          # feature dim of the PyTorch module
ONE_COL = D_IN     # activation column that carries the constant 1 (bias pickup)
D_PAD = 16         # minimal sublane-aligned padding: 10 features + 1 bias col + 5 zeros


def maml_mlp_kernel(x_ref, w1_ref, w2_ref, o_ref):
    # x_ref : (TT, Bp, 16)  activations; column ONE_COL holds 1.0
    # w*_ref: (TT, 16, 16)  (in, out)-layout weights with the bias stored in row ONE_COL
    x = x_ref[...]
    h = jnp.einsum("tbd,tdo->tbo", x, w1_ref[...],
                   preferred_element_type=jnp.float32)
    h = jnp.maximum(h, 0.0)                       # ReLU; padded cols stay 0
    # re-insert the constant-1 column so layer 2 picks up its bias row
    col = jax.lax.broadcasted_iota(jnp.int32, h.shape, 2)
    h = jnp.where(col == ONE_COL, 1.0, h)
    y = jnp.einsum("tbd,tdo->tbo", h, w2_ref[...],
                   preferred_element_type=jnp.float32)
    o_ref[...] = y.astype(o_ref.dtype)


def _round_up(n, m):
    return (n + m - 1) // m * m


def maml_forward_tasks(x, w1, b1, w2, b2, *, task_block=32):
    """Batched MAML forward over T independent tasks.

    x:  (T, B, 10)       per-task inputs
    w1, w2: (T, 10, 10)  PyTorch layout (out_features, in_features)
    b1, b2: (T, 10)
    returns (T, B, 10)
    """
    T, B, D_in = x.shape
    D_out = w2.shape[-2]

    Bp = _round_up(B, 8)

    # Tasks per grid step: as large as requested, but keep >= 2 grid steps (pipelining
    # + v7x two-TensorCore split) and an even step count whenever there is >1 task.
    TT = max(1, min(task_block, T))
    if T > 1 and TT >= T:
        TT = _round_up(T, 2) // 2
    num_chunks = pl.cdiv(T, TT)
    if num_chunks > 1:
        num_chunks = _round_up(num_chunks, 2)
    Tp = num_chunks * TT

    # --- activations: pad to (Tp, Bp, 16) and plant the bias column of ones ---
    xp = jnp.pad(x.astype(jnp.float32),
                 ((0, Tp - T), (0, Bp - B), (0, D_PAD - D_in)))
    xp = xp.at[:, :, ONE_COL].set(1.0)

    # --- weights: (out, in) -> (in, out), append bias row at ONE_COL, pad to 16x16 ---
    def augment(w, b):
        wt = jnp.swapaxes(w, -1, -2).astype(jnp.float32)                  # (T, in, out)
        wb = jnp.concatenate([wt, b.astype(jnp.float32)[:, None, :]], axis=1)
        return jnp.pad(wb, ((0, Tp - T), (0, D_PAD - (D_in + 1)), (0, D_PAD - D_out)))

    w1a = augment(w1, b1)
    w2a = augment(w2, b2)

    out_bytes = Tp * Bp * D_PAD * 4
    cost = pl.CostEstimate(
        flops=2 * 2 * Tp * Bp * D_PAD * D_PAD,
        transcendentals=0,
        bytes_accessed=int(xp.nbytes + w1a.nbytes + w2a.nbytes + out_bytes))

    out_padded = pl.pallas_call(
        maml_mlp_kernel,
        out_shape=jax.ShapeDtypeStruct((Tp, Bp, D_PAD), jnp.float32),
        grid=(num_chunks,),
        in_specs=[
            pl.BlockSpec((TT, Bp, D_PAD), lambda t: (t, 0, 0)),      # x (+ ones col)
            pl.BlockSpec((TT, D_PAD, D_PAD), lambda t: (t, 0, 0)),   # w1^T (+ b1 row)
            pl.BlockSpec((TT, D_PAD, D_PAD), lambda t: (t, 0, 0)),   # w2^T (+ b2 row)
        ],
        out_specs=pl.BlockSpec((TT, Bp, D_PAD), lambda t: (t, 0, 0)),
        compiler_params=pltpu.CompilerParams(
            dimension_semantics=("parallel",)),   # shard task chunks across TCs on v7x
        cost_estimate=cost,
    )(xp, w1a, w2a)

    return out_padded[:T, :B, :D_out]


def maml_forward(x, w1, b1, w2, b2):
    """Single-module forward matching the PyTorch MAML.forward: x (B,10) -> (B,10)."""
    out = maml_forward_tasks(x[None], w1[None], b1[None], w2[None], b2[None])
    return out[0]


def reference_forward(x, w1, b1, w2, b2):
    h = jnp.maximum(x @ w1.T + b1, 0.0)
    return h @ w2.T + b2


if __name__ == "__main__":
    key = jax.random.PRNGKey(0)
    kx, k1, k2, k3, k4, ktx, kt1, kt2, kt3, kt4 = jax.random.split(key, 10)

    B, D = 8, 10
    bound = 1.0 / jnp.sqrt(D)

    # --- single-task forward (exact semantics of the PyTorch module) ---
    x = jax.random.normal(kx, (B, D), dtype=jnp.float32)
    w1 = jax.random.uniform(k1, (D, D), jnp.float32, -bound, bound)
    b1 = jax.random.uniform(k2, (D,), jnp.float32, -bound, bound)
    w2 = jax.random.uniform(k3, (D, D), jnp.float32, -bound, bound)
    b2 = jax.random.uniform(k4, (D,), jnp.float32, -bound, bound)

    out = jax.block_until_ready(maml_forward(x, w1, b1, w2, b2))
    ref = reference_forward(x, w1, b1, w2, b2)
    assert out.shape == (B, D)
    assert jnp.allclose(out, ref, atol=1e-5, rtol=1e-5), "single-task mismatch"

    # --- task-batched forward (the perf-relevant path: T tasks in one call) ---
    T = 16
    xt = jax.random.normal(ktx, (T, B, D), dtype=jnp.float32)
    w1t = jax.random.uniform(kt1, (T, D, D), jnp.float32, -bound, bound)
    b1t = jax.random.uniform(kt2, (T, D), jnp.float32, -bound, bound)
    w2t = jax.random.uniform(kt3, (T, D, D), jnp.float32, -bound, bound)
    b2t = jax.random.uniform(kt4, (T, D), jnp.float32, -bound, bound)

    out_t = jax.block_until_ready(
        maml_forward_tasks(xt, w1t, b1t, w2t, b2t, task_block=32))
    ref_t = jax.vmap(reference_forward)(xt, w1t, b1t, w2t, b2t)
    assert out_t.shape == (T, B, D)
    assert jnp.allclose(out_t, ref_t, atol=1e-5, rtol=1e-5), "batched mismatch"

    print("KERNEL_OK")
</pallas_src>

<mosaic_0001>
module attributes {stable_mosaic.version = 11 : i64} {
  func.func @maml_mlp_kernel(%arg0: i32, %arg1: memref<1x8x16xf32, #tpu.memory_space<vmem>>, %arg2: memref<1x16x16xf32, #tpu.memory_space<vmem>>, %arg3: memref<1x16x16xf32, #tpu.memory_space<vmem>>, %arg4: memref<1x8x16xf32, #tpu.memory_space<vmem>>) attributes {dimension_semantics = [#tpu.dimension_semantics<parallel>], iteration_bounds = array<i64: 1>, scalar_prefetch = 0 : i64, scratch_operands = 0 : i64, tpu.core_type = #tpu.core_type<tc>, window_params = [{transform_indices = @transform_0, window_bounds = array<i64: 1, 8, 16>}, {transform_indices = @transform_1, window_bounds = array<i64: 1, 16, 16>}, {transform_indices = @transform_2, window_bounds = array<i64: 1, 16, 16>}, {transform_indices = @transform_3, window_bounds = array<i64: 1, 8, 16>}]} {
    %c0 = arith.constant 0 : index
    %c0_0 = arith.constant 0 : index
    %c0_1 = arith.constant 0 : index
    %0 = vector.load %arg1[%c0, %c0_0, %c0_1] : memref<1x8x16xf32, #tpu.memory_space<vmem>>, vector<1x8x16xf32>
    %c0_2 = arith.constant 0 : index
    %c0_3 = arith.constant 0 : index
    %c0_4 = arith.constant 0 : index
    %1 = vector.load %arg2[%c0_2, %c0_3, %c0_4] : memref<1x16x16xf32, #tpu.memory_space<vmem>>, vector<1x16x16xf32>
    "tpu.trace_start"() <{level = 10 : i32, message = "tbd,tdo->tbo"}> : () -> ()
    %cst = arith.constant dense<0.000000e+00> : vector<1x8x16xf32>
    %2 = tpu.matmul %0, %1, %cst {dimension_numbers = #tpu.dot_dimension_numbers<[2], [1], [1], [2], [0, 0, 0, 1, 1, 2], [0], [0]>} : vector<1x8x16xf32>, vector<1x16x16xf32>, vector<1x8x16xf32> -> vector<1x8x16xf32>
    "tpu.trace_stop"() : () -> ()
    %cst_5 = arith.constant 0.000000e+00 : f32
    %3 = vector.broadcast %cst_5 : f32 to vector<1x8x16xf32>
    %4 = arith.maximumf %2, %3 : vector<1x8x16xf32>
    %5 = tpu.iota {dimensions = array<i32: 2>} : vector<1x8x16xi32>
    %c10_i32 = arith.constant 10 : i32
    %6 = vector.broadcast %c10_i32 : i32 to vector<1x8x16xi32>
    %7 = arith.cmpi eq, %5, %6 : vector<1x8x16xi32>
    %cst_6 = arith.constant 1.000000e+00 : f32
    %8 = vector.broadcast %cst_6 : f32 to vector<1x8x16xf32>
    %9 = arith.select %7, %8, %4 : vector<1x8x16xi1>, vector<1x8x16xf32>
    %c0_7 = arith.constant 0 : index
    %c0_8 = arith.constant 0 : index
    %c0_9 = arith.constant 0 : index
    %10 = vector.load %arg3[%c0_7, %c0_8, %c0_9] : memref<1x16x16xf32, #tpu.memory_space<vmem>>, vector<1x16x16xf32>
    "tpu.trace_start"() <{level = 10 : i32, message = "tbd,tdo->tbo"}> : () -> ()
    %cst_10 = arith.constant dense<0.000000e+00> : vector<1x8x16xf32>
    %11 = tpu.matmul %9, %10, %cst_10 {dimension_numbers = #tpu.dot_dimension_numbers<[2], [1], [1], [2], [0, 0, 0, 1, 1, 2], [0], [0]>} : vector<1x8x16xf32>, vector<1x16x16xf32>, vector<1x8x16xf32> -> vector<1x8x16xf32>
    "tpu.trace_stop"() : () -> ()
    %c0_11 = arith.constant 0 : index
    %c0_12 = arith.constant 0 : index
    %c0_13 = arith.constant 0 : index
    %12 = vector.load %arg4[%c0_11, %c0_12, %c0_13] : memref<1x8x16xf32, #tpu.memory_space<vmem>>, vector<1x8x16xf32>
    tpu.vector_store %arg4[%c0_11, %c0_12, %c0_13], %11 {strides = array<i32>} : memref<1x8x16xf32, #tpu.memory_space<vmem>>, vector<1x8x16xf32>,
    return
  }
  func.func @transform_0(%arg0: i32) -> (i32, i32, i32) {
    %c0_i32 = arith.constant 0 : i32
    %c0_i32_0 = arith.constant 0 : i32
    %c0_i32_1 = arith.constant 0 : i32
    return %arg0, %c0_i32, %c0_i32_0 : i32, i32, i32
  }
  func.func @transform_1(%arg0: i32) -> (i32, i32, i32) {
    %c0_i32 = arith.constant 0 : i32
    %c0_i32_0 = arith.constant 0 : i32
    %c0_i32_1 = arith.constant 0 : i32
    return %arg0, %c0_i32, %c0_i32_0 : i32, i32, i32
  }
  func.func @transform_2(%arg0: i32) -> (i32, i32, i32) {
    %c0_i32 = arith.constant 0 : i32
    %c0_i32_0 = arith.constant 0 : i32
    %c0_i32_1 = arith.constant 0 : i32
    return %arg0, %c0_i32, %c0_i32_0 : i32, i32, i32
  }
  func.func @transform_3(%arg0: i32) -> (i32, i32, i32) {
    %c0_i32 = arith.constant 0 : i32
    %c0_i32_0 = arith.constant 0 : i32
    %c0_i32_1 = arith.constant 0 : i32
    return %arg0, %c0_i32, %c0_i32_0 : i32, i32, i32
  }
}

</mosaic_0001>

<llo_original>
// kernel: tpu_custom_call.1
$region0: #{tpu_custom_call.1}
  #allocation0 [shape = 'u32[]', space=smem, size = 0x4, offset = 0x4, fixed_abs, tag = 'smem constant byte address 0x4 - core index']
  #allocation1 [shape = 'u32[144,128]{1,0:T(1,128)}', space=vmem, size = 0x12000, scoped, tag = 'internal scratch']
  %s0 = inlined_call_operand.hbm [shape: f32[1,8,16], index: 0, kind: input, shape index: {}]
  %s1 = inlined_call_operand.hbm [shape: f32[1,16,16], index: 1, kind: input, shape index: {}]
  %s2 = inlined_call_operand.hbm [shape: f32[1,16,16], index: 2, kind: input, shape index: {}]
  %s3 = inlined_call_operand.hbm [shape: f32[1,8,16], index: 3, kind: output, shape index: {}]
  %s4 = sld [smem:[#allocation0]]
  $region34: #{tpu_custom_call.1} parent=0
    _
  %s6 = ssub.s32 1, %s4
  %s7 = scalar_select 0, %s6, %s4
  $region1: #{tpu_custom_call.1} parent=0
    #allocation2 [shape = 'u8[4096]{0}', space=vmem, size = 0x1000, scoped, tag = 'input window, operand 0, single buffered']
    #allocation3 [shape = 's32[1]{0}', space=sflag, size = 0x4, scoped, tag = 'scoped memory for tpu_custom_call.1']
    #allocation4 [shape = 's32[1]{0}', space=sflag, size = 0x4, scoped, tag = 'scoped memory for tpu_custom_call.1']
    #allocation5 [shape = 'u8[8192]{0}', space=vmem, size = 0x2000, scoped, tag = 'input window, operand 1, single buffered']
    #allocation6 [shape = 's32[1]{0}', space=sflag, size = 0x4, scoped, tag = 'scoped memory for tpu_custom_call.1']
    #allocation7 [shape = 'u8[8192]{0}', space=vmem, size = 0x2000, scoped, tag = 'input window, operand 2, single buffered']
    #allocation8 [shape = 'u8[4096]{0}', space=vmem, size = 0x1000, scoped, tag = 'output window, operand 0, single buffered']
    %8 = vsyncpa [#allocation3], 0
    %9 = vsyncpa [#allocation6], 0
    %10 = vsyncpa [#allocation4], 0
    // Predicated region
    $region2: #{tpu_custom_call.1} parent=1 // pred_check
      _
    $region3: #{tpu_custom_call.1} parent=1 // pred_check_branch
      %12 = sbr.rel (0) target = $region5
    $region4: #{tpu_custom_call.1} parent=1 // pred_region
      %s14 = ssub.s32 128, 128
      %15 = vsyncadd [#allocation3], %s14
      %s17 = sshll.u32 [#allocation2], 4
      %s18 = int_to_ptr.vmem [resolvable:$true] %s17
      %20 = dma.hbm_to_vmem [thread:$0]  %s0, 128, %s18, [#allocation3]
    $region5: #{tpu_custom_call.1} parent=1 // pred_fallthru
      _
    // Predicated region
    $region6: #{tpu_custom_call.1} parent=1 // pred_check
      _
    $region7: #{tpu_custom_call.1} parent=1 // pred_check_branch
      %22 = sbr.rel (0) target = $region9
    $region8: #{tpu_custom_call.1} parent=1 // pred_region
      %s24 = ssub.s32 256, 256
      %25 = vsyncadd [#allocation6], %s24
      %s26 = sshll.u32 [#allocation5], 4
      %s27 = int_to_ptr.vmem [resolvable:$true] %s26
      %32 = dma.hbm_to_vmem [thread:$0]  %s1, 256, %s27, [#allocation6], 128, 128, 8
    $region9: #{tpu_custom_call.1} parent=1 // pred_fallthru
      _
    // Predicated region
    $region10: #{tpu_custom_call.1} parent=1 // pred_check
      _
    $region11: #{tpu_custom_call.1} parent=1 // pred_check_branch
      %34 = sbr.rel (0) target = $region13
    $region12: #{tpu_custom_call.1} parent=1 // pred_region
      %s36 = ssub.s32 256, 256
      %37 = vsyncadd [#allocation6], %s36
      %s38 = sshll.u32 [#allocation7], 4
      %s39 = int_to_ptr.vmem [resolvable:$true] %s38
      %44 = dma.hbm_to_vmem [thread:$0]  %s2, 256, %s39, [#allocation6], 128, 128, 8
    $region13: #{tpu_custom_call.1} parent=1 // pred_fallthru
      _
    // Predicated region
    $region14: #{tpu_custom_call.1} parent=1 // pred_check
      _
    $region15: #{tpu_custom_call.1} parent=1 // pred_check_branch
      %46 = sbr.rel (0) target = $region17
    $region16: #{tpu_custom_call.1} parent=1 // pred_region
      %47 = dma.done [#allocation3], 128
    $region17: #{tpu_custom_call.1} parent=1 // pred_fallthru
      _
    // Predicated region
    $region18: #{tpu_custom_call.1} parent=1 // pred_check
      _
    $region19: #{tpu_custom_call.1} parent=1 // pred_check_branch
      %49 = sbr.rel (0) target = $region21
    $region20: #{tpu_custom_call.1} parent=1 // pred_region
      %50 = dma.done [#allocation6], 256
    $region21: #{tpu_custom_call.1} parent=1 // pred_fallthru
      _
    // Predicated region
    $region22: #{tpu_custom_call.1} parent=1 // pred_check
      _
    $region23: #{tpu_custom_call.1} parent=1 // pred_check_branch
      %52 = sbr.rel (0) target = $region25
    $region24: #{tpu_custom_call.1} parent=1 // pred_region
      %53 = dma.done [#allocation6], 256
    $region25: #{tpu_custom_call.1} parent=1 // pred_fallthru
      _
    %v54 = vld [vmem:[#allocation2] sm:$0xff]
    %v55 = vld [vmem:[#allocation5] sm:$0xff]
    %v56 = vld [vmem:[#allocation5 + $0x8] sm:$0xff]
    %vm57 = vcmask 130048
    %v59 = vsel %vm57, %v54, 0
    %61 = vmatprep.subr.mxu0 0.0
    %62 = vmatpush1.msra.mxu0 %v55
    %63 = vmatprep.subr.mxu0 0.0
    %64 = vmatpush1.msra.mxu0 %v56
    %65 = vmatprep.subr.mxu0 0.0
    %66 = vmatpush1.msra.mxu0 0.0
    %67 = vmatprep.subr.mxu0 0.0
    %68 = vmatpush1.msra.mxu0 0.0
    %69 = vmatprep.subr.mxu0 0.0
    %70 = vmatpush1.msra.mxu0 0.0
    %71 = vmatprep.subr.mxu0 0.0
    %72 = vmatpush1.msra.mxu0 0.0
    %73 = vmatprep.subr.mxu0 0.0
    %74 = vmatpush1.msra.mxu0 0.0
    %75 = vmatprep.subr.mxu0 0.0
    %76 = vmatpush1.msra.mxu0 0.0
    %77 = vmatprep.subr.mxu0 0.0
    %78 = vmatpush1.msra.mxu0 0.0
    %79 = vmatprep.subr.mxu0 0.0
    %80 = vmatpush1.msra.mxu0 0.0
    %81 = vmatprep.subr.mxu0 0.0
    %82 = vmatpush1.msra.mxu0 0.0
    %83 = vmatprep.subr.mxu0 0.0
    %84 = vmatpush1.msra.mxu0 0.0
    %85 = vmatprep.subr.mxu0 0.0
    %86 = vmatpush1.msra.mxu0 0.0
    %87 = vmatprep.subr.mxu0 0.0
    %88 = vmatpush1.msra.mxu0 0.0
    %89 = vmatprep.subr.mxu0 0.0
    %90 = vmatpush1.msra.mxu0 0.0
    %91 = vmatprep.subr.mxu0 0.0
    %92 = vmatpush1.msra.mxu0 0.0
    %93 = vmatprep.subr.mxu0 0.0
    %94 = vmatpush1.msra.mxu0 0.0
    %95 = vmatprep.subr.mxu0 0.0
    %96 = vmatpush1.msra.mxu0 0.0
    %97 = vmatprep.subr.mxu0 0.0
    %98 = vmatpush1.msra.mxu0 0.0
    %99 = vmatprep.subr.mxu0 0.0
    %100 = vmatpush1.msra.mxu0 0.0
    %101 = vmatprep.subr.mxu0 0.0
    %102 = vmatpush1.msra.mxu0 0.0
    %103 = vmatprep.subr.mxu0 0.0
    %104 = vmatpush1.msra.mxu0 0.0
    %105 = vmatprep.subr.mxu0 0.0
    %106 = vmatpush1.msra.mxu0 0.0
    %107 = vmatprep.subr.mxu0 0.0
    %108 = vmatpush1.msra.mxu0 0.0
    %109 = vmatprep.subr.mxu0 0.0
    %110 = vmatpush1.msra.mxu0 0.0
    %111 = vmatprep.subr.mxu0 0.0
    %112 = vmatpush1.msra.mxu0 0.0
    %113 = vmatprep.subr.mxu0 0.0
    %114 = vmatpush1.msra.mxu0 0.0
    %115 = vmatprep.subr.mxu0 0.0
    %116 = vmatpush1.msra.mxu0 0.0
    %117 = vmatprep.subr.mxu0 0.0
    %118 = vmatpush1.msra.mxu0 0.0
    %119 = vmatprep.subr.mxu0 0.0
    %120 = vmatpush1.msra.mxu0 0.0
    %121 = vmatprep.subr.mxu0 0.0
    %122 = vmatpush1.msra.mxu0 0.0
    %123 = vmatprep.subr.mxu0 0.0
    %124 = vmatpush1.msra.mxu0 0.0
    %125 = vmatprep.mubr.f32.mxu0 0.0
    %126 = vmatmul.mubr.f32.gmra.mrb[0].mxu0 %v59
    %v127 = vpop.f32.mrb[0].mxu0
    %v128 = vadd.f32 0.0, %v127
    %v129 = vpop.f32.mrb[0].mxu0
    %130 = vdwg.mxu0
    %v131 = vmax.f32 %v128, 0.0
    %v132 = vlaneseq
    %v133 = vand.u32 %v132, 127
    %vm134 = vcmp.eq.s32.totalorder %v133, 10
    %v135 = vsel %vm134, 1.0, %v131
    %v136 = vld [vmem:[#allocation7] sm:$0xff]
    %v137 = vld [vmem:[#allocation7 + $0x8] sm:$0xff]
    %v139 = vsel %vm57, %v135, 0
    %141 = vmatprep.subr.mxu0 0.0
    %142 = vmatpush1.msra.mxu0 %v136
    %143 = vmatprep.subr.mxu0 0.0
    %144 = vmatpush1.msra.mxu0 %v137
    %145 = vmatprep.subr.mxu0 0.0
    %146 = vmatpush1.msra.mxu0 0.0
    %147 = vmatprep.subr.mxu0 0.0
    %148 = vmatpush1.msra.mxu0 0.0
    %149 = vmatprep.subr.mxu0 0.0
    %150 = vmatpush1.msra.mxu0 0.0
    %151 = vmatprep.subr.mxu0 0.0
    %152 = vmatpush1.msra.mxu0 0.0
    %153 = vmatprep.subr.mxu0 0.0
    %154 = vmatpush1.msra.mxu0 0.0
    %155 = vmatprep.subr.mxu0 0.0
    %156 = vmatpush1.msra.mxu0 0.0
    %157 = vmatprep.subr.mxu0 0.0
    %158 = vmatpush1.msra.mxu0 0.0
    %159 = vmatprep.subr.mxu0 0.0
    %160 = vmatpush1.msra.mxu0 0.0
    %161 = vmatprep.subr.mxu0 0.0
    %162 = vmatpush1.msra.mxu0 0.0
    %163 = vmatprep.subr.mxu0 0.0
    %164 = vmatpush1.msra.mxu0 0.0
    %165 = vmatprep.subr.mxu0 0.0
    %166 = vmatpush1.msra.mxu0 0.0
    %167 = vmatprep.subr.mxu0 0.0
    %168 = vmatpush1.msra.mxu0 0.0
    %169 = vmatprep.subr.mxu0 0.0
    %170 = vmatpush1.msra.mxu0 0.0
    %171 = vmatprep.subr.mxu0 0.0
    %172 = vmatpush1.msra.mxu0 0.0
    %173 = vmatprep.subr.mxu0 0.0
    %174 = vmatpush1.msra.mxu0 0.0
    %175 = vmatprep.subr.mxu0 0.0
    %176 = vmatpush1.msra.mxu0 0.0
    %177 = vmatprep.subr.mxu0 0.0
    %178 = vmatpush1.msra.mxu0 0.0
    %179 = vmatprep.subr.mxu0 0.0
    %180 = vmatpush1.msra.mxu0 0.0
    %181 = vmatprep.subr.mxu0 0.0
    %182 = vmatpush1.msra.mxu0 0.0
    %183 = vmatprep.subr.mxu0 0.0
    %184 = vmatpush1.msra.mxu0 0.0
    %185 = vmatprep.subr.mxu0 0.0
    %186 = vmatpush1.msra.mxu0 0.0
    %187 = vmatprep.subr.mxu0 0.0
    %188 = vmatpush1.msra.mxu0 0.0
    %189 = vmatprep.subr.mxu0 0.0
    %190 = vmatpush1.msra.mxu0 0.0
    %191 = vmatprep.subr.mxu0 0.0
    %192 = vmatpush1.msra.mxu0 0.0
    %193 = vmatprep.subr.mxu0 0.0
    %194 = vmatpush1.msra.mxu0 0.0
    %195 = vmatprep.subr.mxu0 0.0
    %196 = vmatpush1.msra.mxu0 0.0
    %197 = vmatprep.subr.mxu0 0.0
    %198 = vmatpush1.msra.mxu0 0.0
    %199 = vmatprep.subr.mxu0 0.0
    %200 = vmatpush1.msra.mxu0 0.0
    %201 = vmatprep.subr.mxu0 0.0
    %202 = vmatpush1.msra.mxu0 0.0
    %203 = vmatprep.subr.mxu0 0.0
    %204 = vmatpush1.msra.mxu0 0.0
    %205 = vmatprep.mubr.f32.mxu0 0.0
    %206 = vmatmul.mubr.f32.gmra.mrb[0].mxu0 %v139
    %v207 = vpop.f32.mrb[0].mxu0
    %v208 = vadd.f32 0.0, %v207
    %v209 = vpop.f32.mrb[0].mxu0
    %210 = vdwg.mxu0
    %211 = vst.msk [vmem:[#allocation8] sm:$0xff] %vm57, %v208
    // Predicated region
    $region26: #{tpu_custom_call.1} parent=1 // pred_check
      _
    $region27: #{tpu_custom_call.1} parent=1 // pred_check_branch
      %213 = sbr.rel (0) target = $region29
    $region28: #{tpu_custom_call.1} parent=1 // pred_region
      %s215 = ssub.s32 128, 128
      %216 = vsyncadd [#allocation4], %s215
      %s218 = sshll.u32 [#allocation8], 4
      %s219 = int_to_ptr.vmem [resolvable:$true] %s218
      %221 = dma.vmem_to_hbm [thread:$0]  %s219, 128, %s3, [#allocation4]
    $region29: #{tpu_custom_call.1} parent=1 // pred_fallthru
      _
    // Predicated region
    $region30: #{tpu_custom_call.1} parent=1 // pred_check
      _
    $region31: #{tpu_custom_call.1} parent=1 // pred_check_branch
      %223 = sbr.rel (0) target = $region33
    $region32: #{tpu_custom_call.1} parent=1 // pred_region
      %224 = dma.done [#allocation4], 128
    $region33: #{tpu_custom_call.1} parent=1 // pred_fallthru
      _
    %225 = vsyncpa [#allocation3], 1
    %226 = vsyncpa [#allocation6], 1
    %227 = vsyncpa [#allocation4], 1

</llo_original>
